<compile_context>
chip_gen: v7x
topology: tpu7x:2x2x1
jax: 0.10.0
libtpu: 0.0.40
codegen_flags: <defaults>
</compile_context>

<pallas_src>
import functools
import math

import jax
import jax.numpy as jnp
from jax import lax
from jax.experimental import pallas as pl
from jax.experimental.pallas import tpu as pltpu


def _sdpa_kernel(q_ref, k_ref, v_ref, m_ref, ctx_ref, attn_ref, *, inv_sqrt_dim):
    # Block shapes are (1, rows, cols); index [0] strips the unit batch dim so the
    # MXU sees clean 2-D tiles.
    q = q_ref[0]          # (q_tile, d_model)
    k = k_ref[0]          # (k_len, d_model)
    v = v_ref[0]          # (k_len, d_model)
    mask = m_ref[0]       # (q_tile, k_len)

    # Scale q (q_tile * d elements) instead of the (q_tile, k_len) score tile.
    q_scaled = q * jnp.asarray(inv_sqrt_dim, dtype=q.dtype)

    # score = (q / sqrt(d)) @ k^T  -- transposed-RHS contraction, no explicit k.T.
    score = lax.dot_general(
        q_scaled,
        k,
        dimension_numbers=(((1,), (1,)), ((), ())),
        preferred_element_type=jnp.float32,
    )
    score = score + mask.astype(jnp.float32)

    # Numerically-stable softmax over the full key axis.
    score_max = jnp.max(score, axis=-1, keepdims=True)
    unnorm = jnp.exp(score - score_max)
    denom = jnp.sum(unnorm, axis=-1, keepdims=True)
    # Exact reciprocal: attn is a returned output; approx=True would perturb it ~1e-3.
    attn = unnorm * pl.reciprocal(denom, approx=False)

    # context = attn @ v  (f32 accumulation on the MXU).
    context = jnp.dot(attn.astype(v.dtype), v, preferred_element_type=jnp.float32)

    ctx_ref[0] = context.astype(ctx_ref.dtype)
    attn_ref[0] = attn.astype(attn_ref.dtype)


def _pick_q_tile(q_len, k_len, d_model, itemsize, budget_bytes):
    """Largest q tile (multiple of 8, dividing q_len, or q_len itself) fitting the budget."""
    candidates = [q_len] + [
        t for t in (512, 256, 128, 64, 32, 16, 8) if t < q_len and q_len % t == 0
    ]
    # K + V blocks (constant over the grid, counted double-buffered to be safe).
    fixed = 4 * k_len * d_model * itemsize
    for t in candidates:  # already descending
        # q, ctx (q_tile*d) and mask, attn (q_tile*k_len), each double-buffered.
        per_step = 4 * t * (k_len + d_model) * itemsize + fixed
        if per_step <= budget_bytes:
            return t
    return candidates[-1]


# Scoped-VMEM request: safe on v7x (64 MiB physical), generous on v5e/v6e (128 MiB).
_VMEM_LIMIT_BYTES = 48 * 1024 * 1024
_BLOCK_BUDGET_BYTES = 36 * 1024 * 1024


@functools.partial(jax.jit, static_argnames=())
def scaled_dot_product_attention(query, key, value, mask):
    """query: (B, q_len, d), key/value: (B, k_len, d), mask: (B, q_len, k_len)."""
    B, q_len, d_model = query.shape
    _, k_len, _ = key.shape
    assert value.shape == (B, k_len, d_model)
    assert mask.shape == (B, q_len, k_len)

    inv_sqrt_dim = 1.0 / math.sqrt(d_model)
    itemsize = jnp.dtype(query.dtype).itemsize
    q_tile = _pick_q_tile(q_len, k_len, d_model, itemsize, _BLOCK_BUDGET_BYTES)
    num_q_tiles = q_len // q_tile

    kernel = functools.partial(_sdpa_kernel, inv_sqrt_dim=inv_sqrt_dim)

    out_shapes = (
        jax.ShapeDtypeStruct((B, q_len, d_model), query.dtype),  # context
        jax.ShapeDtypeStruct((B, q_len, k_len), query.dtype),    # attn
    )

    grid_spec = pltpu.PrefetchScalarGridSpec(
        num_scalar_prefetch=0,
        grid=(B, num_q_tiles),
        in_specs=[
            pl.BlockSpec((1, q_tile, d_model), lambda b, qi: (b, qi, 0)),   # q tile
            pl.BlockSpec((1, k_len, d_model), lambda b, qi: (b, 0, 0)),     # full K
            pl.BlockSpec((1, k_len, d_model), lambda b, qi: (b, 0, 0)),     # full V
            pl.BlockSpec((1, q_tile, k_len), lambda b, qi: (b, qi, 0)),     # mask row-slab
        ],
        out_specs=[
            pl.BlockSpec((1, q_tile, d_model), lambda b, qi: (b, qi, 0)),   # context
            pl.BlockSpec((1, q_tile, k_len), lambda b, qi: (b, qi, 0)),     # attn row-slab
        ],
    )

    context, attn = pl.pallas_call(
        kernel,
        out_shape=out_shapes,
        grid_spec=grid_spec,
        compiler_params=pltpu.CompilerParams(
            dimension_semantics=("parallel", "parallel"),
            vmem_limit_bytes=_VMEM_LIMIT_BYTES,
        ),
    )(query, key, value, mask)
    return context, attn


def _reference(query, key, value, mask):
    d = query.shape[-1]
    score = jnp.einsum("bqd,bkd->bqk", query, key) / jnp.sqrt(jnp.float32(d))
    score = score + mask
    attn = jax.nn.softmax(score, axis=-1)
    context = jnp.einsum("bqk,bkd->bqd", attn, value)
    return context, attn


if __name__ == "__main__":
    B, q_len, k_len, d_model = 2, 8, 8, 32

    key0 = jax.random.PRNGKey(0)
    kq, kk, kv, km = jax.random.split(key0, 4)

    query = jax.random.normal(kq, (B, q_len, d_model), dtype=jnp.float32)
    key_t = jax.random.normal(kk, (B, k_len, d_model), dtype=jnp.float32)
    value = jax.random.normal(kv, (B, k_len, d_model), dtype=jnp.float32)
    # Additive mask (0 = attend, large-negative = masked); random additive bias here.
    mask = jax.random.normal(km, (B, q_len, k_len), dtype=jnp.float32)

    context, attn = scaled_dot_product_attention(query, key_t, value, mask)
    context = jax.block_until_ready(context)
    attn = jax.block_until_ready(attn)

    ref_ctx, ref_attn = _reference(query, key_t, value, mask)
    assert jnp.allclose(context, ref_ctx, atol=1e-5, rtol=1e-5), "context mismatch"
    assert jnp.allclose(attn, ref_attn, atol=1e-5, rtol=1e-5), "attn mismatch"

    print("KERNEL_OK")
</pallas_src>

<mosaic_0001>
module attributes {stable_mosaic.version = 11 : i64} {
  func.func @_sdpa_kernel(%arg0: i32, %arg1: i32, %arg2: memref<1x8x32xf32, #tpu.memory_space<vmem>>, %arg3: memref<1x8x32xf32, #tpu.memory_space<vmem>>, %arg4: memref<1x8x32xf32, #tpu.memory_space<vmem>>, %arg5: memref<1x8x8xf32, #tpu.memory_space<vmem>>, %arg6: memref<1x8x32xf32, #tpu.memory_space<vmem>>, %arg7: memref<1x8x8xf32, #tpu.memory_space<vmem>>) attributes {dimension_semantics = [#tpu.dimension_semantics<parallel>, #tpu.dimension_semantics<parallel>], iteration_bounds = array<i64: 2, 1>, scalar_prefetch = 0 : i64, scratch_operands = 0 : i64, tpu.core_type = #tpu.core_type<tc>, window_params = [{transform_indices = @transform_0, window_bounds = array<i64: 1, 8, 32>}, {transform_indices = @transform_1, window_bounds = array<i64: 1, 8, 32>}, {transform_indices = @transform_2, window_bounds = array<i64: 1, 8, 32>}, {transform_indices = @transform_3, window_bounds = array<i64: 1, 8, 8>}, {transform_indices = @transform_4, window_bounds = array<i64: 1, 8, 32>}, {transform_indices = @transform_5, window_bounds = array<i64: 1, 8, 8>}]} {
    %c0 = arith.constant 0 : index
    %c0_0 = arith.constant 0 : index
    %c0_1 = arith.constant 0 : index
    %0 = vector.load %arg2[%c0, %c0_0, %c0_1] : memref<1x8x32xf32, #tpu.memory_space<vmem>>, vector<1x8x32xf32>
    %1 = vector.shape_cast %0 : vector<1x8x32xf32> to vector<8x32xf32>
    %c0_2 = arith.constant 0 : index
    %c0_3 = arith.constant 0 : index
    %c0_4 = arith.constant 0 : index
    %2 = vector.load %arg3[%c0_2, %c0_3, %c0_4] : memref<1x8x32xf32, #tpu.memory_space<vmem>>, vector<1x8x32xf32>
    %3 = vector.shape_cast %2 : vector<1x8x32xf32> to vector<8x32xf32>
    %c0_5 = arith.constant 0 : index
    %c0_6 = arith.constant 0 : index
    %c0_7 = arith.constant 0 : index
    %4 = vector.load %arg4[%c0_5, %c0_6, %c0_7] : memref<1x8x32xf32, #tpu.memory_space<vmem>>, vector<1x8x32xf32>
    %5 = vector.shape_cast %4 : vector<1x8x32xf32> to vector<8x32xf32>
    %c0_8 = arith.constant 0 : index
    %c0_9 = arith.constant 0 : index
    %c0_10 = arith.constant 0 : index
    %6 = vector.load %arg5[%c0_8, %c0_9, %c0_10] : memref<1x8x8xf32, #tpu.memory_space<vmem>>, vector<1x8x8xf32>
    %7 = vector.shape_cast %6 : vector<1x8x8xf32> to vector<8x8xf32>
    %cst = arith.constant 0.176776692 : f32
    %8 = vector.broadcast %cst : f32 to vector<8x32xf32>
    %9 = arith.mulf %1, %8 : vector<8x32xf32>
    %cst_11 = arith.constant dense<0.000000e+00> : vector<8x8xf32>
    %10 = tpu.matmul %9, %3, %cst_11 {dimension_numbers = #tpu.dot_dimension_numbers<[1], [1], [0], [0], [0, 0, 1, 0], [], []>} : vector<8x32xf32>, vector<8x32xf32>, vector<8x8xf32> -> vector<8x8xf32>
    %11 = arith.addf %10, %7 : vector<8x8xf32>
    %cst_12 = arith.constant dense<0xFF800000> : vector<8xf32>
    %12 = vector.multi_reduction <maximumf>, %11, %cst_12 [1] : vector<8x8xf32> to vector<8xf32>
    %13 = vector.shape_cast %12 : vector<8xf32> to vector<8x1xf32>
    %14 = vector.broadcast %13 : vector<8x1xf32> to vector<8x8xf32>
    %15 = arith.subf %11, %14 : vector<8x8xf32>
    %16 = math.exp %15 : vector<8x8xf32>
    %cst_13 = arith.constant dense<0.000000e+00> : vector<8xf32>
    %17 = vector.multi_reduction <add>, %16, %cst_13 [1] : vector<8x8xf32> to vector<8xf32>
    %18 = vector.shape_cast %17 : vector<8xf32> to vector<8x1xf32>
    %19 = tpu.reciprocal %18 : vector<8x1xf32> -> vector<8x1xf32>
    %20 = vector.broadcast %19 : vector<8x1xf32> to vector<8x8xf32>
    %21 = arith.mulf %16, %20 : vector<8x8xf32>
    %cst_14 = arith.constant dense<0.000000e+00> : vector<8x32xf32>
    %22 = tpu.matmul %21, %5, %cst_14 {dimension_numbers = #tpu.dot_dimension_numbers<[1], [0], [0], [1], [0, 0, 1, 1], [], []>} : vector<8x8xf32>, vector<8x32xf32>, vector<8x32xf32> -> vector<8x32xf32>
    %c0_15 = arith.constant 0 : index
    %c0_16 = arith.constant 0 : index
    %c0_17 = arith.constant 0 : index
    %23 = vector.load %arg6[%c0_15, %c0_16, %c0_17] : memref<1x8x32xf32, #tpu.memory_space<vmem>>, vector<1x8x32xf32>
    %24 = vector.shape_cast %23 : vector<1x8x32xf32> to vector<8x32xf32>
    %25 = vector.shape_cast %22 : vector<8x32xf32> to vector<1x8x32xf32>
    tpu.vector_store %arg6[%c0_15, %c0_16, %c0_17], %25 {strides = array<i32>} : memref<1x8x32xf32, #tpu.memory_space<vmem>>, vector<1x8x32xf32>,
    %c0_18 = arith.constant 0 : index
    %c0_19 = arith.constant 0 : index
    %c0_20 = arith.constant 0 : index
    %26 = vector.load %arg7[%c0_18, %c0_19, %c0_20] : memref<1x8x8xf32, #tpu.memory_space<vmem>>, vector<1x8x8xf32>
    %27 = vector.shape_cast %26 : vector<1x8x8xf32> to vector<8x8xf32>
    %28 = vector.shape_cast %21 : vector<8x8xf32> to vector<1x8x8xf32>
    tpu.vector_store %arg7[%c0_18, %c0_19, %c0_20], %28 {strides = array<i32>} : memref<1x8x8xf32, #tpu.memory_space<vmem>>, vector<1x8x8xf32>,
    return
  }
  func.func @transform_0(%arg0: i32, %arg1: i32) -> (i32, i32, i32) {
    %c0_i32 = arith.constant 0 : i32
    %c0_i32_0 = arith.constant 0 : i32
    return %arg0, %arg1, %c0_i32 : i32, i32, i32
  }
  func.func @transform_1(%arg0: i32, %arg1: i32) -> (i32, i32, i32) {
    %c0_i32 = arith.constant 0 : i32
    %c0_i32_0 = arith.constant 0 : i32
    %c0_i32_1 = arith.constant 0 : i32
    return %arg0, %c0_i32, %c0_i32_0 : i32, i32, i32
  }
  func.func @transform_2(%arg0: i32, %arg1: i32) -> (i32, i32, i32) {
    %c0_i32 = arith.constant 0 : i32
    %c0_i32_0 = arith.constant 0 : i32
    %c0_i32_1 = arith.constant 0 : i32
    return %arg0, %c0_i32, %c0_i32_0 : i32, i32, i32
  }
  func.func @transform_3(%arg0: i32, %arg1: i32) -> (i32, i32, i32) {
    %c0_i32 = arith.constant 0 : i32
    %c0_i32_0 = arith.constant 0 : i32
    return %arg0, %arg1, %c0_i32 : i32, i32, i32
  }
  func.func @transform_4(%arg0: i32, %arg1: i32) -> (i32, i32, i32) {
    %c0_i32 = arith.constant 0 : i32
    %c0_i32_0 = arith.constant 0 : i32
    return %arg0, %arg1, %c0_i32 : i32, i32, i32
  }
  func.func @transform_5(%arg0: i32, %arg1: i32) -> (i32, i32, i32) {
    %c0_i32 = arith.constant 0 : i32
    %c0_i32_0 = arith.constant 0 : i32
    return %arg0, %arg1, %c0_i32 : i32, i32, i32
  }
}

</mosaic_0001>

<llo_original>
// kernel: scaled_dot_product_attention.1
$region0: #{scaled_dot_product_attention.1}
  #allocation0 [shape = 'u32[]', space=smem, size = 0x4, offset = 0x4, fixed_abs, tag = 'smem constant byte address 0x4 - core index']
  #allocation1 [shape = 'u32[144,128]{1,0:T(1,128)}', space=vmem, size = 0x12000, scoped, tag = 'internal scratch']
  %s0 = inlined_call_operand.hbm [shape: f32[2,8,32], index: 0, kind: input, shape index: {}]
  %s1 = inlined_call_operand.hbm [shape: f32[2,8,32], index: 1, kind: input, shape index: {}]
  %s2 = inlined_call_operand.hbm [shape: f32[2,8,32], index: 2, kind: input, shape index: {}]
  %s3 = inlined_call_operand.hbm [shape: f32[2,8,8], index: 3, kind: input, shape index: {}]
  %s4 = inlined_call_operand.hbm [shape: f32[2,8,32], index: 4, kind: output, shape index: {0}]
  %s5 = inlined_call_operand.hbm [shape: f32[2,8,8], index: 5, kind: output, shape index: {1}]
  %6 = xla_tuple %s4, %s5
  %s7 = sld [smem:[#allocation0]]
  $region73: #{scaled_dot_product_attention.1} parent=0
    _
  %s9 = ssub.s32 1, %s7
  %s10 = scalar_select 0, %s9, %s7
  $region1: #{scaled_dot_product_attention.1} parent=0
    #allocation2 [shape = 'u8[8192]{0}', space=vmem, size = 0x2000, scoped, tag = 'input window, operand 0']
    #allocation3 [shape = 's32[2]{0}', space=sflag, size = 0x8, scoped, tag = 'scoped memory for scaled_dot_product_attention.1']
    #allocation4 [shape = 's32[2]{0}', space=sflag, size = 0x8, scoped, tag = 'scoped memory for scaled_dot_product_attention.1']
    #allocation5 [shape = 'u8[8192]{0}', space=vmem, size = 0x2000, scoped, tag = 'input window, operand 1']
    #allocation6 [shape = 's32[2]{0}', space=sflag, size = 0x8, scoped, tag = 'scoped memory for scaled_dot_product_attention.1']
    #allocation7 [shape = 'u8[8192]{0}', space=vmem, size = 0x2000, scoped, tag = 'input window, operand 2']
    #allocation8 [shape = 'u8[8192]{0}', space=vmem, size = 0x2000, scoped, tag = 'input window, operand 3']
    #allocation9 [shape = 's32[2]{0}', space=sflag, size = 0x8, scoped, tag = 'scoped memory for scaled_dot_product_attention.1']
    #allocation10 [shape = 'u8[8192]{0}', space=vmem, size = 0x2000, scoped, tag = 'output window, operand 0']
    #allocation11 [shape = 'u8[8192]{0}', space=vmem, size = 0x2000, scoped, tag = 'output window, operand 1']
    #allocation12 [shape = 's32[2]{0}', space=sflag, size = 0x8, scoped, tag = 'scoped memory for scaled_dot_product_attention.1']
    %11 = vsyncpa [#allocation3], 0
    %s12 = scalar_lea.sflag [#allocation3], 1
    %13 = vsyncpa %s12, 0
    %14 = vsyncpa [#allocation6], 0
    %s15 = scalar_lea.sflag [#allocation6], 1
    %16 = vsyncpa %s15, 0
    %17 = vsyncpa [#allocation9], 0
    %s18 = scalar_lea.sflag [#allocation9], 1
    %19 = vsyncpa %s18, 0
    %20 = vsyncpa [#allocation4], 0
    %s21 = scalar_lea.sflag [#allocation4], 1
    %22 = vsyncpa %s21, 0
    %23 = vsyncpa [#allocation12], 0
    %s24 = scalar_lea.sflag [#allocation12], 1
    %25 = vsyncpa %s24, 0
    loop: start=0, step=1, limit=4
    $region2: #{scaled_dot_product_attention.1} parent=1 // loop_pre_header
      _
    $region3: #{scaled_dot_product_attention.1} parent=1 // loop_header
      %s27 = sphi 0, %s31
      %p28 = scmp.ge.s32.totalorder %s27, 4
      %s34 = sphi 0, %s46
      %s35 = sphi 0, %s42
      %s36 = sphi 0, %s34
      %s37 = sphi 0, %s35
      %s38 = sphi 0, %s36
      %s39 = sphi 0, %s37
      %s51 = sphi 0, %s53
      %s54 = sphi 0, %s51
      %s55 = sphi 0, %s54
      %s71 = sphi 0, %s55
      %s77 = sphi 0, %s79
      %s80 = sphi 0, %s77
      %s81 = sphi 0, %s80
      %s97 = sphi 0, %s81
      %s103 = sphi 0, %s105
      %s106 = sphi 0, %s103
      %s107 = sphi 0, %s106
      %s123 = sphi 0, %s107
      %s131 = sphi 0, %s133
      %s134 = sphi 0, %s131
      %s135 = sphi 0, %s134
      %s151 = sphi 0, %s135
      %s159 = sphi 0, %s161
      %s162 = sphi 0, %s159
      %s163 = sphi 0, %s162
      %s179 = sphi 0, %s163
      %s187 = sphi 0, %s189
      %s190 = sphi 0, %s187
      %s191 = sphi 0, %s190
      %s207 = sphi 0, %s191
    $region4: #{scaled_dot_product_attention.1} parent=1 // loop_header_branch
      %30 = sbr.rel (%p28) target = $region8
    $region5: #{scaled_dot_product_attention.1} parent=1 // loop_body
      %s32 = ssub.s32 %s27, 1
      %s33 = ssub.s32 %s27, 2
      %s40 = sadd.s32 1, %s35
      %p41 = scmp.ge.s32.totalorder %s40, 1
      %s42 = scalar_select %p41, 0, %s40
      %s43 = sadd.s32 1, %s34
      %s44 = scalar_select %p41, %s43, %s34
      %p45 = scmp.ge.s32.totalorder %s44, 2
      %s46 = scalar_select %p45, 0, %s44
      %s47 = ssub.s32 %s34, %s46
      %s48 = ssub.s32 %s35, %s42
      %s49 = sor.u32 %s47, %s48
      %p50 = scmp.eq.s32.totalorder %s49, 0
      %s52 = sadd.s32 %s51, 1
      %s53 = scalar_select %p50, %s51, %s52
      %p56 = pneg %p50
      %p57 = scmp.eq.s32.totalorder %s27, 1
      %p58 = por %p56, %p57
      %p59 = scmp.ne.s32.totalorder %s51, %s54
      %p60 = scmp.eq.s32.totalorder %s27, 0
      %p61 = por %p59, %p60
      %p62 = scmp.ne.s32.totalorder %s51, %s54
      %p63 = scmp.eq.s32.totalorder %s32, 1
      %p64 = por %p62, %p63
      %p65 = scmp.ne.s32.totalorder %s54, %s55
      %p66 = scmp.eq.s32.totalorder %s32, 0
      %p67 = por %p65, %p66
      %p68 = scmp.ne.s32.totalorder %s54, %s55
      %p69 = scmp.eq.s32.totalorder %s33, 1
      %p70 = por %p68, %p69
      %p72 = scmp.ne.s32.totalorder %s55, %s71
      %p73 = scmp.eq.s32.totalorder %s33, 0
      %p74 = por %p72, %p73
      %s75 = ssub.s32 %s34, %s46
      %p76 = scmp.eq.s32.totalorder %s75, 0
      %s78 = sadd.s32 %s77, 1
      %s79 = scalar_select %p76, %s77, %s78
      %p82 = pneg %p76
      %p83 = scmp.eq.s32.totalorder %s27, 1
      %p84 = por %p82, %p83
      %p85 = scmp.ne.s32.totalorder %s77, %s80
      %p86 = scmp.eq.s32.totalorder %s27, 0
      %p87 = por %p85, %p86
      %p88 = scmp.ne.s32.totalorder %s77, %s80
      %p89 = scmp.eq.s32.totalorder %s32, 1
      %p90 = por %p88, %p89
      %p91 = scmp.ne.s32.totalorder %s80, %s81
      %p92 = scmp.eq.s32.totalorder %s32, 0
      %p93 = por %p91, %p92
      %p94 = scmp.ne.s32.totalorder %s80, %s81
      %p95 = scmp.eq.s32.totalorder %s33, 1
      %p96 = por %p94, %p95
      %p98 = scmp.ne.s32.totalorder %s81, %s97
      %p99 = scmp.eq.s32.totalorder %s33, 0
      %p100 = por %p98, %p99
      %s101 = ssub.s32 %s34, %s46
      %p102 = scmp.eq.s32.totalorder %s101, 0
      %s104 = sadd.s32 %s103, 1
      %s105 = scalar_select %p102, %s103, %s104
      %p108 = pneg %p102
      %p109 = scmp.eq.s32.totalorder %s27, 1
      %p110 = por %p108, %p109
      %p111 = scmp.ne.s32.totalorder %s103, %s106
      %p112 = scmp.eq.s32.totalorder %s27, 0
      %p113 = por %p111, %p112
      %p114 = scmp.ne.s32.totalorder %s103, %s106
      %p115 = scmp.eq.s32.totalorder %s32, 1
      %p116 = por %p114, %p115
      %p117 = scmp.ne.s32.totalorder %s106, %s107
      %p118 = scmp.eq.s32.totalorder %s32, 0
      %p119 = por %p117, %p118
      %p120 = scmp.ne.s32.totalorder %s106, %s107
      %p121 = scmp.eq.s32.totalorder %s33, 1
      %p122 = por %p120, %p121
      %p124 = scmp.ne.s32.totalorder %s107, %s123
      %p125 = scmp.eq.s32.totalorder %s33, 0
      %p126 = por %p124, %p125
      %s127 = ssub.s32 %s34, %s46
      %s128 = ssub.s32 %s35, %s42
      %s129 = sor.u32 %s127, %s128
      %p130 = scmp.eq.s32.totalorder %s129, 0
      %s132 = sadd.s32 %s131, 1
      %s133 = scalar_select %p130, %s131, %s132
      %p136 = pneg %p130
      %p137 = scmp.eq.s32.totalorder %s27, 1
      %p138 = por %p136, %p137
      %p139 = scmp.ne.s32.totalorder %s131, %s134
      %p140 = scmp.eq.s32.totalorder %s27, 0
      %p141 = por %p139, %p140
      %p142 = scmp.ne.s32.totalorder %s131, %s134
      %p143 = scmp.eq.s32.totalorder %s32, 1
      %p144 = por %p142, %p143
      %p145 = scmp.ne.s32.totalorder %s134, %s135
      %p146 = scmp.eq.s32.totalorder %s32, 0
      %p147 = por %p145, %p146
      %p148 = scmp.ne.s32.totalorder %s134, %s135
      %p149 = scmp.eq.s32.totalorder %s33, 1
      %p150 = por %p148, %p149
      %p152 = scmp.ne.s32.totalorder %s135, %s151
      %p153 = scmp.eq.s32.totalorder %s33, 0
      %p154 = por %p152, %p153
      %s155 = ssub.s32 %s34, %s46
      %s156 = ssub.s32 %s35, %s42
      %s157 = sor.u32 %s155, %s156
      %p158 = scmp.eq.s32.totalorder %s157, 0
      %s160 = sadd.s32 %s159, 1
      %s161 = scalar_select %p158, %s159, %s160
      %p164 = pneg %p158
      %p165 = scmp.eq.s32.totalorder %s27, 1
      %p166 = por %p164, %p165
      %p167 = scmp.ne.s32.totalorder %s159, %s162
      %p168 = scmp.eq.s32.totalorder %s27, 0
      %p169 = por %p167, %p168
      %p170 = scmp.ne.s32.totalorder %s159, %s162
      %p171 = scmp.eq.s32.totalorder %s32, 1
      %p172 = por %p170, %p171
      %p173 = scmp.ne.s32.totalorder %s162, %s163
      %p174 = scmp.eq.s32.totalorder %s32, 0
      %p175 = por %p173, %p174
      %p176 = scmp.ne.s32.totalorder %s162, %s163
      %p177 = scmp.eq.s32.totalorder %s33, 1
      %p178 = por %p176, %p177
      %p180 = scmp.ne.s32.totalorder %s163, %s179
      %p181 = scmp.eq.s32.totalorder %s33, 0
      %p182 = por %p180, %p181
      %s183 = ssub.s32 %s34, %s46
      %s184 = ssub.s32 %s35, %s42
      %s185 = sor.u32 %s183, %s184
      %p186 = scmp.eq.s32.totalorder %s185, 0
      %s188 = sadd.s32 %s187, 1
      %s189 = scalar_select %p186, %s187, %s188
      %p192 = pneg %p186
      %p193 = scmp.eq.s32.totalorder %s27, 1
      %p194 = por %p192, %p193
      %p195 = scmp.ne.s32.totalorder %s187, %s190
      %p196 = scmp.eq.s32.totalorder %s27, 0
      %p197 = por %p195, %p196
      %p198 = scmp.ne.s32.totalorder %s187, %s190
      %p199 = scmp.eq.s32.totalorder %s32, 1
      %p200 = por %p198, %p199
      %p201 = scmp.ne.s32.totalorder %s190, %s191
      %p202 = scmp.eq.s32.totalorder %s32, 0
      %p203 = por %p201, %p202
      %p204 = scmp.ne.s32.totalorder %s190, %s191
      %p205 = scmp.eq.s32.totalorder %s33, 1
      %p206 = por %p204, %p205
      %p208 = scmp.ne.s32.totalorder %s191, %s207
      %p209 = scmp.eq.s32.totalorder %s33, 0
      %p210 = por %p208, %p209
      %p211 = scmp.le.s32.totalorder 1, %s27
      %p212 = scmp.lt.s32.totalorder %s27, 3
      %p213 = pnand %p211, %p212
      %p214 = pneg %p213
      // Predicated region
      $region9: #{scaled_dot_product_attention.1} parent=5 // pred_check
        _
      $region10: #{scaled_dot_product_attention.1} parent=5 // pred_check_branch
        %216 = sbr.rel (%p213) target = $region12
      $region11: #{scaled_dot_product_attention.1} parent=5 // pred_region
        %s217 = ssub.s32 %s27, 1
      $region12: #{scaled_dot_product_attention.1} parent=5 // pred_fallthru
        _
      %p218 = scmp.lt.s32.totalorder %s27, 2
      // Predicated region
      $region13: #{scaled_dot_product_attention.1} parent=5 // pred_check
        %p219 = pneg %p218
      $region14: #{scaled_dot_product_attention.1} parent=5 // pred_check_branch
        %221 = sbr.rel (%p219) target = $region16
      $region15: #{scaled_dot_product_attention.1} parent=5 // pred_region
        // Predicated region
        $region17: #{scaled_dot_product_attention.1} parent=15 // pred_check
          %p222 = pneg %p61
        $region18: #{scaled_dot_product_attention.1} parent=15 // pred_check_branch
          %224 = sbr.rel (%p222) target = $region20
        $region19: #{scaled_dot_product_attention.1} parent=15 // pred_region
          %s225 = sand.u32 %s51, 1
          %s226 = scalar_lea.sflag [#allocation3], %s225
          %s227 = sand.u32 %s51, 1
          %s228 = smul.addr %s227, 8
          %s229 = scalar_lea.vmem [#allocation2], %s228
          %s231 = ssub.s32 128, 128
          %232 = vsyncadd %s226, %s231
          %s233 = sadd.s32 %s35, %s34
          %s234 = smul.addr %s233, 128
          %s235 = scalar_lea.hbm %s0, %s234
          %s237 = sshll.u32 %s229, 4
          %s238 = int_to_ptr.vmem [resolvable:$true] %s237
          %240 = dma.hbm_to_vmem [thread:$0]  %s235, 128, %s238, %s226
        $region20: #{scaled_dot_product_attention.1} parent=15 // pred_fallthru
          _
        // Predicated region
        $region21: #{scaled_dot_product_attention.1} parent=15 // pred_check
          %p241 = pneg %p87
        $region22: #{scaled_dot_product_attention.1} parent=15 // pred_check_branch
          %243 = sbr.rel (%p241) target = $region24
        $region23: #{scaled_dot_product_attention.1} parent=15 // pred_region
          %s244 = sand.u32 %s27, 1
          %s245 = scalar_lea.sflag [#allocation6], %s244
          %s246 = sand.u32 %s77, 1
          %s247 = smul.addr %s246, 8
          %s248 = scalar_lea.vmem [#allocation5], %s247
          %s250 = ssub.s32 128, 128
          %251 = vsyncadd %s245, %s250
          %s252 = smul.addr %s34, 128
          %s253 = scalar_lea.hbm %s1, %s252
          %s255 = sshll.u32 %s248, 4
          %s256 = int_to_ptr.vmem [resolvable:$true] %s255
          %258 = dma.hbm_to_vmem [thread:$0]  %s253, 128, %s256, %s245
        $region24: #{scaled_dot_product_attention.1} parent=15 // pred_fallthru
          _
        // Predicated region
        $region25: #{scaled_dot_product_attention.1} parent=15 // pred_check
          %p259 = pneg %p113
        $region26: #{scaled_dot_product_attention.1} parent=15 // pred_check_branch
          %261 = sbr.rel (%p259) target = $region28
        $region27: #{scaled_dot_product_attention.1} parent=15 // pred_region
          %s262 = sand.u32 %s27, 1
          %s263 = scalar_lea.sflag [#allocation6], %s262
          %s264 = sand.u32 %s103, 1
          %s265 = smul.addr %s264, 8
          %s266 = scalar_lea.vmem [#allocation7], %s265
          %s268 = ssub.s32 128, 128
          %269 = vsyncadd %s263, %s268
          %s270 = smul.addr %s34, 128
          %s271 = scalar_lea.hbm %s2, %s270
          %s273 = sshll.u32 %s266, 4
          %s274 = int_to_ptr.vmem [resolvable:$true] %s273
          %276 = dma.hbm_to_vmem [thread:$0]  %s271, 128, %s274, %s263
        $region28: #{scaled_dot_product_attention.1} parent=15 // pred_fallthru
          _
        // Predicated region
        $region29: #{scaled_dot_product_attention.1} parent=15 // pred_check
          %p277 = pneg %p141
        $region30: #{scaled_dot_product_attention.1} parent=15 // pred_check_branch
          %279 = sbr.rel (%p277) target = $region32
        $region31: #{scaled_dot_product_attention.1} parent=15 // pred_region
          %s280 = sand.u32 %s131, 1
          %s281 = scalar_lea.sflag [#allocation9], %s280
          %s282 = sand.u32 %s131, 1
          %s283 = smul.addr %s282, 8
          %s284 = scalar_lea.vmem [#allocation8], %s283
          %s286 = ssub.s32 128, 128
          %287 = vsyncadd %s281, %s286
          %s288 = sadd.s32 %s35, %s34
          %s289 = smul.addr %s288, 128
          %s290 = scalar_lea.hbm %s3, %s289
          %s292 = sshll.u32 %s284, 4
          %s293 = int_to_ptr.vmem [resolvable:$true] %s292
          %295 = dma.hbm_to_vmem [thread:$0]  %s290, 128, %s293, %s281
        $region32: #{scaled_dot_product_attention.1} parent=15 // pred_fallthru
          _
      $region16: #{scaled_dot_product_attention.1} parent=5 // pred_fallthru
        _
      %p296 = scmp.le.s32.totalorder 1, %s27
      %p297 = scmp.lt.s32.totalorder %s27, 3
      %p298 = pnand %p296, %p297
      %p299 = pneg %p298
      // Predicated region
      $region33: #{scaled_dot_product_attention.1} parent=5 // pred_check
        _
      $region34: #{scaled_dot_product_attention.1} parent=5 // pred_check_branch
        %301 = sbr.rel (%p298) target = $region36
      $region35: #{scaled_dot_product_attention.1} parent=5 // pred_region
        %s302 = ssub.s32 %s27, 1
        %s303 = sand.u32 %s54, 1
        %s304 = scalar_lea.sflag [#allocation3], %s303
        %s305 = sand.u32 %s54, 1
        %s306 = smul.addr %s305, 8
        %s307 = scalar_lea.vmem [#allocation2], %s306
        // Predicated region
        $region37: #{scaled_dot_product_attention.1} parent=35 // pred_check
          %p308 = pneg %p67
        $region38: #{scaled_dot_product_attention.1} parent=35 // pred_check_branch
          %310 = sbr.rel (%p308) target = $region40
        $region39: #{scaled_dot_product_attention.1} parent=35 // pred_region
          %311 = dma.done %s304, 128
        $region40: #{scaled_dot_product_attention.1} parent=35 // pred_fallthru
          _
        %s312 = sand.u32 %s32, 1
        %s313 = scalar_lea.sflag [#allocation6], %s312
        %s314 = sand.u32 %s80, 1
        %s315 = smul.addr %s314, 8
        %s316 = scalar_lea.vmem [#allocation5], %s315
        // Predicated region
        $region41: #{scaled_dot_product_attention.1} parent=35 // pred_check
          %p317 = pneg %p93
        $region42: #{scaled_dot_product_attention.1} parent=35 // pred_check_branch
          %319 = sbr.rel (%p317) target = $region44
        $region43: #{scaled_dot_product_attention.1} parent=35 // pred_region
          %320 = dma.done %s313, 128
        $region44: #{scaled_dot_product_attention.1} parent=35 // pred_fallthru
          _
        %s321 = sand.u32 %s32, 1
        %s322 = scalar_lea.sflag [#allocation6], %s321
        %s323 = sand.u32 %s106, 1
        %s324 = smul.addr %s323, 8
        %s325 = scalar_lea.vmem [#allocation7], %s324
        // Predicated region
        $region45: #{scaled_dot_product_attention.1} parent=35 // pred_check
          %p326 = pneg %p119
        $region46: #{scaled_dot_product_attention.1} parent=35 // pred_check_branch
          %328 = sbr.rel (%p326) target = $region48
        $region47: #{scaled_dot_product_attention.1} parent=35 // pred_region
          %329 = dma.done %s322, 128
        $region48: #{scaled_dot_product_attention.1} parent=35 // pred_fallthru
          _
        %s330 = sand.u32 %s134, 1
        %s331 = scalar_lea.sflag [#allocation9], %s330
        %s332 = sand.u32 %s134, 1
        %s333 = smul.addr %s332, 8
        %s334 = scalar_lea.vmem [#allocation8], %s333
        // Predicated region
        $region49: #{scaled_dot_product_attention.1} parent=35 // pred_check
          %p335 = pneg %p147
        $region50: #{scaled_dot_product_attention.1} parent=35 // pred_check_branch
          %337 = sbr.rel (%p335) target = $region52
        $region51: #{scaled_dot_product_attention.1} parent=35 // pred_region
          %338 = dma.done %s331, 128
        $region52: #{scaled_dot_product_attention.1} parent=35 // pred_fallthru
          _
        %s339 = sand.u32 %s54, 1
        %s340 = scalar_lea.sflag [#allocation3], %s339
        %s341 = sand.u32 %s54, 1
        %s342 = smul.addr %s341, 8
        %s343 = scalar_lea.vmem [#allocation2], %s342
        %p344 = pneg %p67
        %p345 = pneg %p64
        %s346 = sand.u32 %s32, 1
        %s347 = scalar_lea.sflag [#allocation6], %s346
        %s348 = sand.u32 %s80, 1
        %s349 = smul.addr %s348, 8
        %s350 = scalar_lea.vmem [#allocation5], %s349
        %p351 = pneg %p93
        %p352 = pneg %p90
        %s353 = sand.u32 %s32, 1
        %s354 = scalar_lea.sflag [#allocation6], %s353
        %s355 = sand.u32 %s106, 1
        %s356 = smul.addr %s355, 8
        %s357 = scalar_lea.vmem [#allocation7], %s356
        %p358 = pneg %p119
        %p359 = pneg %p116
        %s360 = sand.u32 %s134, 1
        %s361 = scalar_lea.sflag [#allocation9], %s360
        %s362 = sand.u32 %s134, 1
        %s363 = smul.addr %s362, 8
        %s364 = scalar_lea.vmem [#allocation8], %s363
        %p365 = pneg %p147
        %p366 = pneg %p144
        %p367 = pneg %p175
        %p368 = pneg %p172
        %s369 = sand.u32 %s162, 1
        %s370 = scalar_lea.sflag [#allocation4], %s369
        %s371 = sand.u32 %s162, 1
        %s372 = smul.addr %s371, 8
        %s373 = scalar_lea.vmem [#allocation10], %s372
        %p374 = pneg %p203
        %p375 = pneg %p200
        %s376 = sand.u32 %s190, 1
        %s377 = scalar_lea.sflag [#allocation12], %s376
        %s378 = sand.u32 %s190, 1
        %s379 = smul.addr %s378, 8
        %s380 = scalar_lea.vmem [#allocation11], %s379
        %v381 = vld [vmem:[%s307] sm:$0xff]
        %v382 = vld [vmem:[%s316] sm:$0xff]
        %v383 = vld [vmem:[%s325] sm:$0xff]
        %v384 = vld [vmem:[%s334] sm:$0xff]
        %v385 = vmul.f32 %v381, 0.17677669
        %vm386 = vcmask 261120
        %v388 = vsel %vm386, %v385, 0
        %v391 = vsel %vm386, %v382, 0
        %393 = vmatprep.subr.mxu0 0.0
        %394 = vmatpush1.xpose.msra.mxu0 %v391
        %395 = vmatprep.subr.mxu0 0.0
        %396 = vmatpush1.xpose.msra.mxu0 0.0
        %397 = vmatprep.subr.mxu0 0.0
        %398 = vmatpush1.xpose.msra.mxu0 0.0
        %399 = vmatprep.subr.mxu0 0.0
        %400 = vmatpush1.xpose.msra.mxu0 0.0
        %401 = vmatprep.subr.mxu0 0.0
        %402 = vmatpush1.xpose.msra.mxu0 0.0
        %403 = vmatprep.subr.mxu0 0.0
        %404 = vmatpush1.xpose.msra.mxu0 0.0
        %405 = vmatprep.subr.mxu0 0.0
        %406 = vmatpush1.xpose.msra.mxu0 0.0
        %407 = vmatprep.subr.mxu0 0.0
        %408 = vmatpush1.xpose.msra.mxu0 0.0
        %409 = vmatprep.subr.mxu0 0.0
        %410 = vmatpush1.xpose.msra.mxu0 0.0
        %411 = vmatprep.subr.mxu0 0.0
        %412 = vmatpush1.xpose.msra.mxu0 0.0
        %413 = vmatprep.subr.mxu0 0.0
        %414 = vmatpush1.xpose.msra.mxu0 0.0
        %415 = vmatprep.subr.mxu0 0.0
        %416 = vmatpush1.xpose.msra.mxu0 0.0
        %417 = vmatprep.subr.mxu0 0.0
        %418 = vmatpush1.xpose.msra.mxu0 0.0
        %419 = vmatprep.subr.mxu0 0.0
        %420 = vmatpush1.xpose.msra.mxu0 0.0
        %421 = vmatprep.subr.mxu0 0.0
        %422 = vmatpush1.xpose.msra.mxu0 0.0
        %423 = vmatprep.subr.mxu0 0.0
        %424 = vmatpush1.xpose.msra.mxu0 0.0
        %425 = vmatprep.subr.mxu0 0.0
        %426 = vmatpush1.xpose.msra.mxu0 0.0
        %427 = vmatprep.subr.mxu0 0.0
        %428 = vmatpush1.xpose.msra.mxu0 0.0
        %429 = vmatprep.subr.mxu0 0.0
        %430 = vmatpush1.xpose.msra.mxu0 0.0
        %431 = vmatprep.subr.mxu0 0.0
        %432 = vmatpush1.xpose.msra.mxu0 0.0
        %433 = vmatprep.subr.mxu0 0.0
        %434 = vmatpush1.xpose.msra.mxu0 0.0
        %435 = vmatprep.subr.mxu0 0.0
        %436 = vmatpush1.xpose.msra.mxu0 0.0
        %437 = vmatprep.subr.mxu0 0.0
        %438 = vmatpush1.xpose.msra.mxu0 0.0
        %439 = vmatprep.subr.mxu0 0.0
        %440 = vmatpush1.xpose.msra.mxu0 0.0
        %441 = vmatprep.subr.mxu0 0.0
        %442 = vmatpush1.xpose.msra.mxu0 0.0
        %443 = vmatprep.subr.mxu0 0.0
        %444 = vmatpush1.xpose.msra.mxu0 0.0
        %445 = vmatprep.subr.mxu0 0.0
        %446 = vmatpush1.xpose.msra.mxu0 0.0
        %447 = vmatprep.subr.mxu0 0.0
        %448 = vmatpush1.xpose.msra.mxu0 0.0
        %449 = vmatprep.subr.mxu0 0.0
        %450 = vmatpush1.xpose.msra.mxu0 0.0
        %451 = vmatprep.subr.mxu0 0.0
        %452 = vmatpush1.xpose.msra.mxu0 0.0
        %453 = vmatprep.subr.mxu0 0.0
        %454 = vmatpush1.xpose.msra.mxu0 0.0
        %455 = vmatprep.subr.mxu0 0.0
        %456 = vmatpush1.xpose.msra.mxu0 0.0
        %457 = vmatprep.mubr.f32.mxu0 0.0
        %458 = vmatmul.mubr.f32.gmra.mrb[0].mxu0 %v388
        %v459 = vpop.f32.mrb[0].mxu0
        %v460 = vadd.f32 %v384, %v459
        %v461 = vpop.f32.mrb[0].mxu0
        %462 = vdwg.mxu0
        %vm463 = vcmask 64512
        %v464 = vsel %vm463, %v460, -inf
        %465 = vmax.xlane.f32.xlu0 %v464
        %v466 = vpop.xlane.xlu0 %465
        %v467 = vsub.f32 %v460, %v466
        %v468 = vmul.f32 %v467, 1.442695
        %v469 = vpow.pop %v468
        %v470 = vsel %vm463, %v469, 0.0
        %471 = vadd.xlane.f32.xlu0 %v470
        %v472 = vpop.xlane.xlu0 %471
        %v473 = vrcp.pop %v472
        %v474 = vmul.f32 %v469, %v473
        %v476 = vsel %vm463, %v474, 0
        %478 = vmatprep.subr.mxu0 0.0
        %479 = vmatpush1.msra.mxu0 %v383
        %480 = vmatprep.subr.mxu0 0.0
        %481 = vmatpush1.msra.mxu0 0.0
        %482 = vmatprep.subr.mxu0 0.0
        %483 = vmatpush1.msra.mxu0 0.0
        %484 = vmatprep.subr.mxu0 0.0
        %485 = vmatpush1.msra.mxu0 0.0
        %486 = vmatprep.subr.mxu0 0.0
        %487 = vmatpush1.msra.mxu0 0.0
        %488 = vmatprep.subr.mxu0 0.0
        %489 = vmatpush1.msra.mxu0 0.0
        %490 = vmatprep.subr.mxu0 0.0
        %491 = vmatpush1.msra.mxu0 0.0
        %492 = vmatprep.subr.mxu0 0.0
        %493 = vmatpush1.msra.mxu0 0.0
        %494 = vmatprep.subr.mxu0 0.0
        %495 = vmatpush1.msra.mxu0 0.0
        %496 = vmatprep.subr.mxu0 0.0
        %497 = vmatpush1.msra.mxu0 0.0
        %498 = vmatprep.subr.mxu0 0.0
        %499 = vmatpush1.msra.mxu0 0.0
        %500 = vmatprep.subr.mxu0 0.0
        %501 = vmatpush1.msra.mxu0 0.0
        %502 = vmatprep.subr.mxu0 0.0
        %503 = vmatpush1.msra.mxu0 0.0
        %504 = vmatprep.subr.mxu0 0.0
        %505 = vmatpush1.msra.mxu0 0.0
        %506 = vmatprep.subr.mxu0 0.0
        %507 = vmatpush1.msra.mxu0 0.0
        %508 = vmatprep.subr.mxu0 0.0
        %509 = vmatpush1.msra.mxu0 0.0
        %510 = vmatprep.subr.mxu0 0.0
        %511 = vmatpush1.msra.mxu0 0.0
        %512 = vmatprep.subr.mxu0 0.0
        %513 = vmatpush1.msra.mxu0 0.0
        %514 = vmatprep.subr.mxu0 0.0
        %515 = vmatpush1.msra.mxu0 0.0
        %516 = vmatprep.subr.mxu0 0.0
        %517 = vmatpush1.msra.mxu0 0.0
        %518 = vmatprep.subr.mxu0 0.0
        %519 = vmatpush1.msra.mxu0 0.0
        %520 = vmatprep.subr.mxu0 0.0
        %521 = vmatpush1.msra.mxu0 0.0
        %522 = vmatprep.subr.mxu0 0.0
        %523 = vmatpush1.msra.mxu0 0.0
        %524 = vmatprep.subr.mxu0 0.0
        %525 = vmatpush1.msra.mxu0 0.0
        %526 = vmatprep.subr.mxu0 0.0
        %527 = vmatpush1.msra.mxu0 0.0
        %528 = vmatprep.subr.mxu0 0.0
        %529 = vmatpush1.msra.mxu0 0.0
        %530 = vmatprep.subr.mxu0 0.0
        %531 = vmatpush1.msra.mxu0 0.0
        %532 = vmatprep.subr.mxu0 0.0
        %533 = vmatpush1.msra.mxu0 0.0
        %534 = vmatprep.subr.mxu0 0.0
        %535 = vmatpush1.msra.mxu0 0.0
        %536 = vmatprep.subr.mxu0 0.0
        %537 = vmatpush1.msra.mxu0 0.0
        %538 = vmatprep.subr.mxu0 0.0
        %539 = vmatpush1.msra.mxu0 0.0
        %540 = vmatprep.subr.mxu0 0.0
        %541 = vmatpush1.msra.mxu0 0.0
        %542 = vmatprep.mubr.f32.mxu0 0.0
        %543 = vmatmul.mubr.f32.gmra.mrb[0].mxu0 %v476
        %v544 = vpop.f32.mrb[0].mxu0
        %v545 = vadd.f32 0.0, %v544
        %v546 = vpop.f32.mrb[0].mxu0
        %547 = vdwg.mxu0
        %548 = vst.msk [vmem:[%s373] sm:$0xff] %vm386, %v545
        %549 = vst.msk [vmem:[%s380] sm:$0xff] %vm463, %v474
        %s550 = sand.u32 %s162, 1
        %s551 = scalar_lea.sflag [#allocation4], %s550
        %s552 = sand.u32 %s162, 1
        %s553 = smul.addr %s552, 8
        %s554 = scalar_lea.vmem [#allocation10], %s553
        %s555 = sand.u32 %s190, 1
        %s556 = scalar_lea.sflag [#allocation12], %s555
        %s557 = sand.u32 %s190, 1
        %s558 = smul.addr %s557, 8
        %s559 = scalar_lea.vmem [#allocation11], %s558
        // Predicated region
        $region53: #{scaled_dot_product_attention.1} parent=35 // pred_check
          %p560 = pneg %p172
        $region54: #{scaled_dot_product_attention.1} parent=35 // pred_check_branch
          %562 = sbr.rel (%p560) target = $region56
        $region55: #{scaled_dot_product_attention.1} parent=35 // pred_region
          %s564 = ssub.s32 128, 128
          %565 = vsyncadd %s551, %s564
          %s566 = sadd.s32 %s37, %s36
          %s567 = smul.addr %s566, 128
          %s568 = scalar_lea.hbm %s4, %s567
          %s570 = sshll.u32 %s554, 4
          %s571 = int_to_ptr.vmem [resolvable:$true] %s570
          %573 = dma.vmem_to_hbm [thread:$0]  %s571, 128, %s568, %s551
        $region56: #{scaled_dot_product_attention.1} parent=35 // pred_fallthru
          _
        // Predicated region
        $region57: #{scaled_dot_product_attention.1} parent=35 // pred_check
          %p574 = pneg %p200
        $region58: #{scaled_dot_product_attention.1} parent=35 // pred_check_branch
          %576 = sbr.rel (%p574) target = $region60
        $region59: #{scaled_dot_product_attention.1} parent=35 // pred_region
          %s578 = ssub.s32 128, 128
          %579 = vsyncadd %s556, %s578
          %s580 = sadd.s32 %s37, %s36
          %s581 = smul.addr %s580, 128
          %s582 = scalar_lea.hbm %s5, %s581
          %s584 = sshll.u32 %s559, 4
          %s585 = int_to_ptr.vmem [resolvable:$true] %s584
          %587 = dma.vmem_to_hbm [thread:$0]  %s585, 128, %s582, %s556
        $region60: #{scaled_dot_product_attention.1} parent=35 // pred_fallthru
          _
      $region36: #{scaled_dot_product_attention.1} parent=5 // pred_fallthru
        _
      %p588 = scmp.le.s32.totalorder 2, %s27
      // Predicated region
      $region61: #{scaled_dot_product_attention.1} parent=5 // pred_check
        %p589 = pneg %p588
      $region62: #{scaled_dot_product_attention.1} parent=5 // pred_check_branch
        %591 = sbr.rel (%p589) target = $region64
      $region63: #{scaled_dot_product_attention.1} parent=5 // pred_region
        %s592 = ssub.s32 %s27, 2
        // Predicated region
        $region65: #{scaled_dot_product_attention.1} parent=63 // pred_check
          %p593 = pneg %p178
        $region66: #{scaled_dot_product_attention.1} parent=63 // pred_check_branch
          %595 = sbr.rel (%p593) target = $region68
        $region67: #{scaled_dot_product_attention.1} parent=63 // pred_region
          %s596 = sand.u32 %s163, 1
          %s597 = scalar_lea.sflag [#allocation4], %s596
          %s598 = sand.u32 %s163, 1
          %s599 = smul.addr %s598, 8
          %s600 = scalar_lea.vmem [#allocation10], %s599
          %601 = dma.done %s597, 128
        $region68: #{scaled_dot_product_attention.1} parent=63 // pred_fallthru
          _
        // Predicated region
        $region69: #{scaled_dot_product_attention.1} parent=63 // pred_check
          %p602 = pneg %p206
        $region70: #{scaled_dot_product_attention.1} parent=63 // pred_check_branch
          %604 = sbr.rel (%p602) target = $region72
        $region71: #{scaled_dot_product_attention.1} parent=63 // pred_region
          %s605 = sand.u32 %s191, 1
          %s606 = scalar_lea.sflag [#allocation12], %s605
          %s607 = sand.u32 %s191, 1
          %s608 = smul.addr %s607, 8
          %s609 = scalar_lea.vmem [#allocation11], %s608
          %610 = dma.done %s606, 128
        $region72: #{scaled_dot_product_attention.1} parent=63 // pred_fallthru
          _
      $region64: #{scaled_dot_product_attention.1} parent=5 // pred_fallthru
        _
    $region6: #{scaled_dot_product_attention.1} parent=1 // loop_footer
      %s31 = sadd.s32 1, %s27
    $region7: #{scaled_dot_product_attention.1} parent=1 // loop_footer_branch
      %26 = sbr.rel target = $region3
    $region8: #{scaled_dot_product_attention.1} parent=1 // loop_exit
      _
    %611 = vsyncpa [#allocation3], 1
    %s612 = scalar_lea.sflag [#allocation3], 1
    %613 = vsyncpa %s612, 1
    %614 = vsyncpa [#allocation6], 1
    %s615 = scalar_lea.sflag [#allocation6], 1
    %616 = vsyncpa %s615, 1
    %617 = vsyncpa [#allocation9], 1
    %s618 = scalar_lea.sflag [#allocation9], 1
    %619 = vsyncpa %s618, 1
    %620 = vsyncpa [#allocation4], 1
    %s621 = scalar_lea.sflag [#allocation4], 1
    %622 = vsyncpa %s621, 1
    %623 = vsyncpa [#allocation12], 1
    %s624 = scalar_lea.sflag [#allocation12], 1
    %625 = vsyncpa %s624, 1

</llo_original>
